<compile_context>
chip_gen: v5e
topology: v5e:2x2
jax: 0.10.0
libtpu: 0.0.40
codegen_flags: <defaults>
</compile_context>

<pallas_src>
import numpy as np
import jax
import jax.numpy as jnp
from jax.experimental import pallas as pl
from jax.experimental.pallas import tpu as pltpu


BN_EPS = 1e-5
TILE_M = 512                      # row tile for the generic fused matmul (multiple of 8)
TILE_L = 1024                     # L tile for the stride-1 conv kernel (multiple of 8)
VMEM_LIMIT = 48 * 1024 * 1024     # explicit scoped-VMEM budget (<= v7x 64 MiB/TC)


# ------------------------------------------------------------------
# Kernel 1: generic fused  out = act( X @ W + shift [+ residual] ),  tiled over M.
# ------------------------------------------------------------------
def _mm_kernel(has_residual, activation):
    def kernel(x_ref, w_ref, b_ref, *rest):
        if has_residual:
            r_ref, o_ref = rest
        else:
            (o_ref,) = rest
        acc = jnp.dot(x_ref[...], w_ref[...], preferred_element_type=jnp.float32)
        acc = acc + b_ref[...]                              # folded-BN shift (fp32)
        if has_residual:
            acc = acc + r_ref[...].astype(jnp.float32)      # residual add in fp32
        if activation == "relu":
            acc = jnp.maximum(acc, 0.0)
        o_ref[...] = acc.astype(o_ref.dtype)
    return kernel


def _choose_m_tile(M, max_tile):
    """Pick an M tile that avoids pad/slice copies whenever possible."""
    if M <= max_tile:
        return M, False                       # full-dim block (exempt from 8-divisibility)
    cand = (max_tile // 8) * 8
    while cand >= 8:
        if M % cand == 0:
            return cand, False                # exact divisor, multiple of 8
        cand -= 8
    return (max_tile // 8) * 8, True          # rare: needs pad (M % 8 != 0 and M > tile)


def fused_matmul(x, w, shift, residual=None, activation="none",
                 out_dtype=jnp.bfloat16, tile_m=TILE_M):
    """x: (M, K), w: (K, N), shift: (N,), residual: (M, N) or None."""
    M, K = x.shape
    N = w.shape[1]
    x = x.astype(jnp.bfloat16)
    w = w.astype(jnp.bfloat16)
    shift = shift.reshape(1, N).astype(jnp.float32)
    r = residual.astype(jnp.bfloat16) if residual is not None else None

    tm, needs_pad = _choose_m_tile(M, tile_m)
    if needs_pad:
        Mp = ((M + tm - 1) // tm) * tm
        x = jnp.pad(x, ((0, Mp - M), (0, 0)))
        if r is not None:
            r = jnp.pad(r, ((0, Mp - M), (0, 0)))
    else:
        Mp = M

    args = [x, w, shift]
    in_specs = [pl.BlockSpec((tm, K), lambda i: (i, 0)),
                pl.BlockSpec((K, N), lambda i: (0, 0)),     # weights resident
                pl.BlockSpec((1, N), lambda i: (0, 0))]
    if r is not None:
        args.append(r)
        in_specs.append(pl.BlockSpec((tm, N), lambda i: (i, 0)))

    out = pl.pallas_call(
        _mm_kernel(residual is not None, activation),
        out_shape=jax.ShapeDtypeStruct((Mp, N), out_dtype),
        grid=(Mp // tm,),
        in_specs=in_specs,
        out_specs=pl.BlockSpec((tm, N), lambda i: (i, 0)),
        compiler_params=pltpu.CompilerParams(
            dimension_semantics=("parallel",),
            vmem_limit_bytes=VMEM_LIMIT),
    )(*args)
    return out[:M] if Mp != M else out


# ------------------------------------------------------------------
# Kernel 2: fused k=3 / stride=1 / pad=1 conv + BN-shift [+ residual] + ReLU.
# Reads the UNPADDED activation (no jnp.pad copy).  Three aligned bf16 tap matmuls;
# the +/-1 row shifts happen on fp32 accumulators; tile-edge rows come from two
# 8-row halo blocks (clamped block indices, gated to zero at sequence edges).
# ------------------------------------------------------------------
def _conv3_kernel(has_residual, activation):
    def kernel(x_ref, hp_ref, hn_ref, w_ref, b_ref, *rest):
        if has_residual:
            r_ref, o_ref = rest
        else:
            (o_ref,) = rest
        i = pl.program_id(1)
        n_t = pl.num_programs(1)
        tl = x_ref.shape[1]

        xt = x_ref[0]                                               # (tl, C) bf16
        # out[l] = x[l-1]@w0 + x[l]@w1 + x[l+1]@w2   (zero padding outside [0, L))
        s0 = jnp.dot(xt, w_ref[0], preferred_element_type=jnp.float32)
        s1 = jnp.dot(xt, w_ref[1], preferred_element_type=jnp.float32)
        s2 = jnp.dot(xt, w_ref[2], preferred_element_type=jnp.float32)

        # Halo contributions for the first / last row of this tile (tiny matmuls).
        hp = jnp.dot(hp_ref[0], w_ref[0], preferred_element_type=jnp.float32)   # (8, N)
        hn = jnp.dot(hn_ref[0], w_ref[2], preferred_element_type=jnp.float32)   # (8, N)
        gate_top = (i > 0).astype(jnp.float32)           # first tile: x[-1] is zero pad
        gate_bot = (i < n_t - 1).astype(jnp.float32)     # last tile:  x[L]  is zero pad
        top = hp[7:8] * gate_top                         # x[i*tl - 1]   @ w0
        bot = hn[0:1] * gate_bot                         # x[(i+1)*tl]   @ w2

        acc = s1
        acc = acc + jnp.concatenate([top, s0[:tl - 1]], axis=0)   # shift-down(s0)
        acc = acc + jnp.concatenate([s2[1:], bot], axis=0)        # shift-up(s2)
        acc = acc + b_ref[...]                                    # folded-BN shift (fp32)
        if has_residual:
            acc = acc + r_ref[0].astype(jnp.float32)
        if activation == "relu":
            acc = jnp.maximum(acc, 0.0)
        o_ref[0] = acc.astype(o_ref.dtype)
    return kernel


def _choose_l_tile(L, max_tile=TILE_L):
    """Largest L tile (multiple of 8) that divides L; None -> fallback path."""
    if L % 8 != 0 or L < 8:
        return None
    if L <= max_tile:
        return L
    cand = (max_tile // 8) * 8
    while cand >= 8:
        if L % cand == 0:
            return cand
        cand -= 8
    return None


def conv3_s1(x, w3, shift, residual=None, activation="none", tile_l=None):
    """x: (B, L, C), w3: (3, C, N) (BN scale folded), shift: (N,), residual: (B, L, N)."""
    B, L, C = x.shape
    N = w3.shape[2]
    tl = tile_l if tile_l is not None else _choose_l_tile(L)
    assert tl is not None and tl % 8 == 0 and L % tl == 0, (L, tl)
    x = x.astype(jnp.bfloat16)
    w3 = w3.astype(jnp.bfloat16)
    shift = shift.reshape(1, N).astype(jnp.float32)

    hb = tl // 8                       # 8-row blocks per tile
    last_hblk = L // 8 - 1             # last valid 8-row block index

    in_specs = [
        pl.BlockSpec((1, tl, C), lambda b, i: (b, i, 0)),                       # main tile
        pl.BlockSpec((1, 8, C),
                     lambda b, i: (b, jnp.maximum(i * hb - 1, 0), 0)),          # prev halo
        pl.BlockSpec((1, 8, C),
                     lambda b, i: (b, jnp.minimum((i + 1) * hb, last_hblk), 0)),  # next halo
        pl.BlockSpec((3, C, N), lambda b, i: (0, 0, 0)),                        # weights resident
        pl.BlockSpec((1, N), lambda b, i: (0, 0)),
    ]
    args = [x, x, x, w3, shift]
    if residual is not None:
        args.append(residual.astype(jnp.bfloat16))
        in_specs.append(pl.BlockSpec((1, tl, N), lambda b, i: (b, i, 0)))

    return pl.pallas_call(
        _conv3_kernel(residual is not None, activation),
        out_shape=jax.ShapeDtypeStruct((B, L, N), jnp.bfloat16),
        grid=(B, L // tl),
        in_specs=in_specs,
        out_specs=pl.BlockSpec((1, tl, N), lambda b, i: (b, i, 0)),
        compiler_params=pltpu.CompilerParams(
            dimension_semantics=("parallel", "parallel"),
            vmem_limit_bytes=VMEM_LIMIT),
    )(*args)


def _conv3_reference(x, w3, shift, residual=None, activation="none"):
    """Pure-JAX fp32 reference for conv3_s1 (used only for the in-script self-check)."""
    xf = x.astype(jnp.float32)
    B, L, C = xf.shape
    xp = jnp.pad(xf, ((0, 0), (1, 1), (0, 0)))
    w = w3.astype(jnp.float32)
    out = sum(jnp.einsum("blc,cn->bln", xp[:, k:k + L, :], w[k]) for k in range(3))
    out = out + shift.astype(jnp.float32).reshape(1, 1, -1)
    if residual is not None:
        out = out + residual.astype(jnp.float32)
    if activation == "relu":
        out = jnp.maximum(out, 0.0)
    return out


# ------------------------------------------------------------------
# Kernel 3: head — adaptive avg-pool over L (tiled, accumulated) + FC + sigmoid.
# ------------------------------------------------------------------
def _head_kernel(inv_len):
    def kernel(f_ref, w_ref, b_ref, o_ref, sum_sc):
        @pl.when(pl.program_id(0) == 0)
        def _():
            sum_sc[...] = jnp.zeros_like(sum_sc)

        sum_sc[...] += jnp.sum(f_ref[...].astype(jnp.float32), axis=1)   # (B, C)

        @pl.when(pl.program_id(0) == pl.num_programs(0) - 1)
        def _():
            pooled = sum_sc[...] * inv_len                               # avg pool
            logits = jnp.dot(pooled, w_ref[...],
                             preferred_element_type=jnp.float32) + b_ref[...]
            o_ref[...] = 1.0 / (1.0 + jnp.exp(-logits))                  # sigmoid (fp32)
    return kernel


def head(features, fc_w, fc_b):
    """features: (B, L, C), fc_w: (C, num_classes), fc_b: (num_classes,)."""
    B, L, C = features.shape
    Nc = fc_w.shape[1]
    if L <= 512:
        tl, f = L, features
    else:
        tl = 512
        Lp = ((L + tl - 1) // tl) * tl
        f = jnp.pad(features, ((0, 0), (0, Lp - L), (0, 0)))   # zero pad; mean uses true L
    return pl.pallas_call(
        _head_kernel(1.0 / L),
        out_shape=jax.ShapeDtypeStruct((B, Nc), jnp.float32),
        grid=(f.shape[1] // tl,),
        in_specs=[pl.BlockSpec((B, tl, C), lambda i: (0, i, 0)),
                  pl.BlockSpec((C, Nc), lambda i: (0, 0)),
                  pl.BlockSpec((1, Nc), lambda i: (0, 0))],
        out_specs=pl.BlockSpec((B, Nc), lambda i: (0, 0)),
        scratch_shapes=[pltpu.VMEM((B, C), jnp.float32)],
        compiler_params=pltpu.CompilerParams(
            dimension_semantics=("arbitrary",),
            vmem_limit_bytes=VMEM_LIMIT),
    )(f.astype(jnp.bfloat16), fc_w.astype(jnp.float32),
      fc_b.reshape(1, Nc).astype(jnp.float32))


# ------------------------------------------------------------------
# Fallback path glue (stride-2 convs and tiny tail lengths): im2col in JAX.
# ------------------------------------------------------------------
def im2col_k3(x, stride):
    """x: (B, L, C) -> patches (B*L_out, 3*C) with (k outer, c inner) ordering."""
    B, L, C = x.shape
    xp = jnp.pad(x, ((0, 0), (1, 1), (0, 0)))
    L_out = (L - 1) // stride + 1
    taps = [xp[:, k: k + stride * (L_out - 1) + 1: stride, :] for k in range(3)]
    patches = jnp.stack(taps, axis=2)                 # (B, L_out, 3, C)
    return patches.reshape(B * L_out, 3 * C), L_out


def conv_bn_act(x, w3, shift, stride, residual=None, activation="none"):
    """k=3 conv (pad=1) + folded-BN shift [+ residual] + activation.  x: (B, L, C)."""
    B, L, C = x.shape
    N = w3.shape[2]
    if stride == 1 and _choose_l_tile(L) is not None:
        return conv3_s1(x, w3, shift, residual=residual, activation=activation)
    patches, L_out = im2col_k3(x, stride)
    res2d = residual.reshape(B * L_out, N) if residual is not None else None
    out = fused_matmul(patches, w3.reshape(3 * C, N), shift,
                       residual=res2d, activation=activation)
    return out.reshape(B, L_out, N)


# ------------------------------------------------------------------
# Parameter initialization (deterministic, synthetic).  BN scale folded into weights.
# ------------------------------------------------------------------
def bn_fold(gamma, beta, mean, var):
    scale = gamma / jnp.sqrt(var + BN_EPS)
    shift = beta - mean * scale
    return scale, shift


def init_conv(key, k, cin, cout):
    bound = 1.0 / np.sqrt(cin * k)
    return jax.random.uniform(key, (k, cin, cout), jnp.float32, -bound, bound)


def init_bn(key, c):
    k1, k2, k3, k4 = jax.random.split(key, 4)
    gamma = 1.0 + 0.1 * jax.random.normal(k1, (c,), jnp.float32)
    beta = 0.1 * jax.random.normal(k2, (c,), jnp.float32)
    mean = 0.1 * jax.random.normal(k3, (c,), jnp.float32)
    var = 1.0 + 0.1 * jax.random.uniform(k4, (c,), jnp.float32)
    return bn_fold(gamma, beta, mean, var)


def init_block(key, cin, cout, stride):
    keys = jax.random.split(key, 6)
    blk = {"stride": stride, "cin": cin, "cout": cout}
    s1, b1 = init_bn(keys[1], cout)
    blk["w1"] = (init_conv(keys[0], 3, cin, cout) * s1).astype(jnp.bfloat16)
    blk["b1"] = b1
    s2, b2 = init_bn(keys[3], cout)
    blk["w2"] = (init_conv(keys[2], 3, cout, cout) * s2).astype(jnp.bfloat16)
    blk["b2"] = b2
    if stride != 1 or cin != cout:
        ss, bs = init_bn(keys[5], cout)
        blk["ws"] = (init_conv(keys[4], 1, cin, cout)[0] * ss).astype(jnp.bfloat16)
        blk["bs"] = bs
    return blk


def init_resnet18(key, num_classes=1):
    params = {}
    keys = jax.random.split(key, 12)
    # stem: Conv1d(2, 64, k=3, s=1, p=1) + BN.  Scale folded; Cin zero-padded 2 -> 8.
    s, b = init_bn(keys[1], 64)
    w = init_conv(keys[0], 3, 2, 64) * s
    params["stem_w"] = jnp.pad(w, ((0, 0), (0, 6), (0, 0))).astype(jnp.bfloat16)
    params["stem_b"] = b

    plan = [("layer1", 64, 1), ("layer2", 128, 2), ("layer3", 256, 2), ("layer4", 512, 2)]
    in_planes, ki = 64, 2
    for name, planes, stride in plan:
        blocks = []
        for s_ in (stride, 1):
            blocks.append(init_block(keys[ki], in_planes, planes, s_))
            in_planes = planes
            ki += 1
        params[name] = blocks

    bound = 1.0 / np.sqrt(512)
    params["fc_w"] = jax.random.uniform(keys[10], (512, num_classes), jnp.float32, -bound, bound)
    params["fc_b"] = jax.random.uniform(keys[11], (num_classes,), jnp.float32, -bound, bound)
    return params


# ------------------------------------------------------------------
# Forward pass
# ------------------------------------------------------------------
def basic_block(x, blk):
    B, L, Cin = x.shape
    stride, cout = blk["stride"], blk["cout"]

    # conv1 + bn1 + relu (fused)
    out1 = conv_bn_act(x, blk["w1"], blk["b1"], stride, activation="relu")
    L1 = out1.shape[1]

    # shortcut path
    if "ws" in blk:
        # TODO(synk): fuse this 1x1 strided projection into conv2's residual kernel.
        xs = x[:, ::stride, :][:, :L1, :].reshape(B * L1, Cin)        # 1x1 strided conv
        sc = fused_matmul(xs, blk["ws"], blk["bs"]).reshape(B, L1, cout)
    else:
        assert stride == 1 and Cin == cout, "identity shortcut requires matching shapes"
        sc = x

    # conv2 + bn2 + residual add + relu (fused into one kernel)
    return conv_bn_act(out1, blk["w2"], blk["b2"], 1, residual=sc, activation="relu")


def resnet18_forward(x, params):
    """x: (B, L, 2) float (channels-last; equivalent to PyTorch's (B, L, 2) input)."""
    B, L, Cin = x.shape
    assert Cin == 2
    x = x.astype(jnp.bfloat16)
    # Pad input channels 2 -> 8 (stem weight rows 2..7 are zero): avoids a K=6 matmul.
    x = jnp.pad(x, ((0, 0), (0, 0), (0, 6)))

    out = conv_bn_act(x, params["stem_w"], params["stem_b"], 1, activation="relu")
    for name in ("layer1", "layer2", "layer3", "layer4"):
        for blk in params[name]:
            out = basic_block(out, blk)

    return head(out, params["fc_w"], params["fc_b"])


# ------------------------------------------------------------------
if __name__ == "__main__":
    key = jax.random.PRNGKey(0)
    kp, kx, kc1, kc2, kc3, kc4, km1, km2 = jax.random.split(key, 8)

    # --- self-check 1: multi-tile halo conv kernel vs. fp32 reference (forced tl=8) ---
    Bc, Lc, Cc, Nc = 2, 32, 128, 128
    xc = jax.random.normal(kc1, (Bc, Lc, Cc), jnp.float32).astype(jnp.bfloat16)
    wc = (0.05 * jax.random.normal(kc2, (3, Cc, Nc), jnp.float32)).astype(jnp.bfloat16)
    sc = 0.1 * jax.random.normal(kc3, (Nc,), jnp.float32)
    rc = jax.random.normal(kc4, (Bc, Lc, Nc), jnp.float32).astype(jnp.bfloat16)
    got = conv3_s1(xc, wc, sc, residual=rc, activation="relu", tile_l=8)
    ref = _conv3_reference(xc, wc, sc, residual=rc, activation="relu")
    err = float(jnp.max(jnp.abs(got.astype(jnp.float32) - ref)))
    assert err < 0.06, f"conv3_s1 halo-path mismatch: max abs err = {err}"

    # --- self-check 2: fused matmul multi-tile path (tm divides M, no pad/slice) ---
    Mm, Km, Nm = 48, 64, 128
    xm = jax.random.normal(km1, (Mm, Km), jnp.float32).astype(jnp.bfloat16)
    wm = (0.1 * jax.random.normal(km2, (Km, Nm), jnp.float32)).astype(jnp.bfloat16)
    sm = jnp.zeros((Nm,), jnp.float32)
    gm = fused_matmul(xm, wm, sm, activation="relu", tile_m=16)
    rm = jnp.maximum(xm.astype(jnp.float32) @ wm.astype(jnp.float32), 0.0)
    errm = float(jnp.max(jnp.abs(gm.astype(jnp.float32) - rm)))
    assert errm < 0.06, f"fused_matmul mismatch: max abs err = {errm}"

    # --- end-to-end ResNet18 forward at small shapes ---
    params = init_resnet18(kp, num_classes=1)
    B, L = 2, 16
    x = jax.random.normal(kx, (B, L, 2), jnp.float32)

    fwd = jax.jit(lambda inp: resnet18_forward(inp, params))
    out = jax.block_until_ready(fwd(x))

    assert out.shape == (B, 1), out.shape
    assert bool(jnp.all((out >= 0.0) & (out <= 1.0))), out
    print("KERNEL_OK")
</pallas_src>

<mosaic_0001>
module attributes {stable_mosaic.version = 11 : i64} {
  func.func @kernel(%arg0: i32, %arg1: i32, %arg2: memref<1x8x128xbf16, #tpu.memory_space<vmem>>, %arg3: memref<1x8x128xbf16, #tpu.memory_space<vmem>>, %arg4: memref<1x8x128xbf16, #tpu.memory_space<vmem>>, %arg5: memref<3x128x128xbf16, #tpu.memory_space<vmem>>, %arg6: memref<1x128xf32, #tpu.memory_space<vmem>>, %arg7: memref<1x8x128xbf16, #tpu.memory_space<vmem>>, %arg8: memref<1x8x128xbf16, #tpu.memory_space<vmem>>) attributes {dimension_semantics = [#tpu.dimension_semantics<parallel>, #tpu.dimension_semantics<parallel>], iteration_bounds = array<i64: 2, 4>, scalar_prefetch = 0 : i64, scratch_operands = 0 : i64, tpu.core_type = #tpu.core_type<tc>, window_params = [{transform_indices = @transform_0, window_bounds = array<i64: 1, 8, 128>}, {transform_indices = @transform_1, window_bounds = array<i64: 1, 8, 128>}, {transform_indices = @transform_2, window_bounds = array<i64: 1, 8, 128>}, {pipeline_mode = #tpu.pipeline_mode<synchronous>, transform_indices = @transform_3, window_bounds = array<i64: 3, 128, 128>}, {pipeline_mode = #tpu.pipeline_mode<synchronous>, transform_indices = @transform_4, window_bounds = array<i64: 1, 128>}, {transform_indices = @transform_5, window_bounds = array<i64: 1, 8, 128>}, {transform_indices = @transform_6, window_bounds = array<i64: 1, 8, 128>}]} {
    %c0 = arith.constant 0 : index
    %c0_0 = arith.constant 0 : index
    %c0_1 = arith.constant 0 : index
    %0 = vector.load %arg2[%c0, %c0_0, %c0_1] : memref<1x8x128xbf16, #tpu.memory_space<vmem>>, vector<1x8x128xbf16>
    %1 = vector.shape_cast %0 : vector<1x8x128xbf16> to vector<8x128xbf16>
    %c0_2 = arith.constant 0 : index
    %c0_3 = arith.constant 0 : index
    %c0_4 = arith.constant 0 : index
    %2 = vector.load %arg5[%c0_2, %c0_3, %c0_4] : memref<3x128x128xbf16, #tpu.memory_space<vmem>>, vector<1x128x128xbf16>
    %3 = vector.shape_cast %2 : vector<1x128x128xbf16> to vector<128x128xbf16>
    %cst = arith.constant dense<0.000000e+00> : vector<8x128xf32>
    %4 = tpu.matmul %1, %3, %cst {dimension_numbers = #tpu.dot_dimension_numbers<[1], [0], [0], [1], [0, 0, 1, 1], [], []>} : vector<8x128xbf16>, vector<128x128xbf16>, vector<8x128xf32> -> vector<8x128xf32>
    %c1 = arith.constant 1 : index
    %c0_5 = arith.constant 0 : index
    %c0_6 = arith.constant 0 : index
    %5 = vector.load %arg5[%c1, %c0_5, %c0_6] : memref<3x128x128xbf16, #tpu.memory_space<vmem>>, vector<1x128x128xbf16>
    %6 = vector.shape_cast %5 : vector<1x128x128xbf16> to vector<128x128xbf16>
    %cst_7 = arith.constant dense<0.000000e+00> : vector<8x128xf32>
    %7 = tpu.matmul %1, %6, %cst_7 {dimension_numbers = #tpu.dot_dimension_numbers<[1], [0], [0], [1], [0, 0, 1, 1], [], []>} : vector<8x128xbf16>, vector<128x128xbf16>, vector<8x128xf32> -> vector<8x128xf32>
    %c2 = arith.constant 2 : index
    %c0_8 = arith.constant 0 : index
    %c0_9 = arith.constant 0 : index
    %8 = vector.load %arg5[%c2, %c0_8, %c0_9] : memref<3x128x128xbf16, #tpu.memory_space<vmem>>, vector<1x128x128xbf16>
    %9 = vector.shape_cast %8 : vector<1x128x128xbf16> to vector<128x128xbf16>
    %cst_10 = arith.constant dense<0.000000e+00> : vector<8x128xf32>
    %10 = tpu.matmul %1, %9, %cst_10 {dimension_numbers = #tpu.dot_dimension_numbers<[1], [0], [0], [1], [0, 0, 1, 1], [], []>} : vector<8x128xbf16>, vector<128x128xbf16>, vector<8x128xf32> -> vector<8x128xf32>
    %c0_11 = arith.constant 0 : index
    %c0_12 = arith.constant 0 : index
    %c0_13 = arith.constant 0 : index
    %11 = vector.load %arg3[%c0_11, %c0_12, %c0_13] : memref<1x8x128xbf16, #tpu.memory_space<vmem>>, vector<1x8x128xbf16>
    %12 = vector.shape_cast %11 : vector<1x8x128xbf16> to vector<8x128xbf16>
    %c0_14 = arith.constant 0 : index
    %c0_15 = arith.constant 0 : index
    %c0_16 = arith.constant 0 : index
    %13 = vector.load %arg5[%c0_14, %c0_15, %c0_16] : memref<3x128x128xbf16, #tpu.memory_space<vmem>>, vector<1x128x128xbf16>
    %14 = vector.shape_cast %13 : vector<1x128x128xbf16> to vector<128x128xbf16>
    %cst_17 = arith.constant dense<0.000000e+00> : vector<8x128xf32>
    %15 = tpu.matmul %12, %14, %cst_17 {dimension_numbers = #tpu.dot_dimension_numbers<[1], [0], [0], [1], [0, 0, 1, 1], [], []>} : vector<8x128xbf16>, vector<128x128xbf16>, vector<8x128xf32> -> vector<8x128xf32>
    %c0_18 = arith.constant 0 : index
    %c0_19 = arith.constant 0 : index
    %c0_20 = arith.constant 0 : index
    %16 = vector.load %arg4[%c0_18, %c0_19, %c0_20] : memref<1x8x128xbf16, #tpu.memory_space<vmem>>, vector<1x8x128xbf16>
    %17 = vector.shape_cast %16 : vector<1x8x128xbf16> to vector<8x128xbf16>
    %c2_21 = arith.constant 2 : index
    %c0_22 = arith.constant 0 : index
    %c0_23 = arith.constant 0 : index
    %18 = vector.load %arg5[%c2_21, %c0_22, %c0_23] : memref<3x128x128xbf16, #tpu.memory_space<vmem>>, vector<1x128x128xbf16>
    %19 = vector.shape_cast %18 : vector<1x128x128xbf16> to vector<128x128xbf16>
    %cst_24 = arith.constant dense<0.000000e+00> : vector<8x128xf32>
    %20 = tpu.matmul %17, %19, %cst_24 {dimension_numbers = #tpu.dot_dimension_numbers<[1], [0], [0], [1], [0, 0, 1, 1], [], []>} : vector<8x128xbf16>, vector<128x128xbf16>, vector<8x128xf32> -> vector<8x128xf32>
    %c0_i32 = arith.constant 0 : i32
    %21 = arith.cmpi sgt, %arg1, %c0_i32 : i32
    %22 = arith.extui %21 : i1 to i32
    %23 = arith.sitofp %22 : i32 to f32
    %c3_i32 = arith.constant 3 : i32
    %24 = arith.cmpi slt, %arg1, %c3_i32 : i32
    %25 = arith.extui %24 : i1 to i32
    %26 = arith.sitofp %25 : i32 to f32
    %27 = vector.extract_strided_slice %15 {offsets = [7, 0], sizes = [1, 128], strides = [1, 1]} : vector<8x128xf32> to vector<1x128xf32>
    %28 = vector.broadcast %23 : f32 to vector<1x128xf32>
    %29 = arith.mulf %27, %28 : vector<1x128xf32>
    %30 = vector.extract_strided_slice %20 {offsets = [0, 0], sizes = [1, 128], strides = [1, 1]} : vector<8x128xf32> to vector<1x128xf32>
    %31 = vector.broadcast %26 : f32 to vector<1x128xf32>
    %32 = arith.mulf %30, %31 : vector<1x128xf32>
    %33 = vector.extract_strided_slice %4 {offsets = [0, 0], sizes = [7, 128], strides = [1, 1]} : vector<8x128xf32> to vector<7x128xf32>
    %34 = tpu.concatenate %29, %33 in 0 : vector<1x128xf32>, vector<7x128xf32> -> vector<8x128xf32>
    %35 = arith.addf %7, %34 : vector<8x128xf32>
    %36 = vector.extract_strided_slice %10 {offsets = [1, 0], sizes = [7, 128], strides = [1, 1]} : vector<8x128xf32> to vector<7x128xf32>
    %37 = tpu.concatenate %36, %32 in 0 : vector<7x128xf32>, vector<1x128xf32> -> vector<8x128xf32>
    %38 = arith.addf %35, %37 : vector<8x128xf32>
    %c0_25 = arith.constant 0 : index
    %c0_26 = arith.constant 0 : index
    %39 = vector.load %arg6[%c0_25, %c0_26] : memref<1x128xf32, #tpu.memory_space<vmem>>, vector<1x128xf32>
    %40 = vector.broadcast %39 : vector<1x128xf32> to vector<8x128xf32>
    %41 = arith.addf %38, %40 : vector<8x128xf32>
    %c0_27 = arith.constant 0 : index
    %c0_28 = arith.constant 0 : index
    %c0_29 = arith.constant 0 : index
    %42 = vector.load %arg7[%c0_27, %c0_28, %c0_29] : memref<1x8x128xbf16, #tpu.memory_space<vmem>>, vector<1x8x128xbf16>
    %43 = vector.shape_cast %42 : vector<1x8x128xbf16> to vector<8x128xbf16>
    %44 = arith.extf %43 : vector<8x128xbf16> to vector<8x128xf32>
    %45 = arith.addf %41, %44 : vector<8x128xf32>
    %cst_30 = arith.constant 0.000000e+00 : f32
    %46 = vector.broadcast %cst_30 : f32 to vector<8x128xf32>
    %47 = arith.maximumf %45, %46 : vector<8x128xf32>
    %48 = arith.truncf %47 : vector<8x128xf32> to vector<8x128xbf16>
    %c0_31 = arith.constant 0 : index
    %c0_32 = arith.constant 0 : index
    %c0_33 = arith.constant 0 : index
    %49 = vector.load %arg8[%c0_31, %c0_32, %c0_33] : memref<1x8x128xbf16, #tpu.memory_space<vmem>>, vector<1x8x128xbf16>
    %50 = vector.shape_cast %49 : vector<1x8x128xbf16> to vector<8x128xbf16>
    %51 = vector.shape_cast %48 : vector<8x128xbf16> to vector<1x8x128xbf16>
    tpu.vector_store %arg8[%c0_31, %c0_32, %c0_33], %51 {strides = array<i32>} : memref<1x8x128xbf16, #tpu.memory_space<vmem>>, vector<1x8x128xbf16>,
    return
  }
  func.func @transform_0(%arg0: i32, %arg1: i32) -> (i32, i32, i32) {
    %c0_i32 = arith.constant 0 : i32
    %c0_i32_0 = arith.constant 0 : i32
    return %arg0, %arg1, %c0_i32 : i32, i32, i32
  }
  func.func @transform_1(%arg0: i32, %arg1: i32) -> (i32, i32, i32) {
    %c1_i32 = arith.constant 1 : i32
    %0 = arith.muli %arg1, %c1_i32 : i32
    %c1_i32_0 = arith.constant 1 : i32
    %1 = arith.subi %0, %c1_i32_0 : i32
    %c0_i32 = arith.constant 0 : i32
    %2 = arith.maxsi %1, %c0_i32 : i32
    %c0_i32_1 = arith.constant 0 : i32
    %c0_i32_2 = arith.constant 0 : i32
    return %arg0, %2, %c0_i32_1 : i32, i32, i32
  }
  func.func @transform_2(%arg0: i32, %arg1: i32) -> (i32, i32, i32) {
    %c1_i32 = arith.constant 1 : i32
    %0 = arith.addi %arg1, %c1_i32 : i32
    %c1_i32_0 = arith.constant 1 : i32
    %1 = arith.muli %0, %c1_i32_0 : i32
    %c3_i32 = arith.constant 3 : i32
    %2 = arith.minsi %1, %c3_i32 : i32
    %c0_i32 = arith.constant 0 : i32
    %c0_i32_1 = arith.constant 0 : i32
    return %arg0, %2, %c0_i32 : i32, i32, i32
  }
  func.func @transform_3(%arg0: i32, %arg1: i32) -> (i32, i32, i32) {
    %c0_i32 = arith.constant 0 : i32
    %c0_i32_0 = arith.constant 0 : i32
    %c0_i32_1 = arith.constant 0 : i32
    %c0_i32_2 = arith.constant 0 : i32
    return %c0_i32, %c0_i32_0, %c0_i32_1 : i32, i32, i32
  }
  func.func @transform_4(%arg0: i32, %arg1: i32) -> (i32, i32) {
    %c0_i32 = arith.constant 0 : i32
    %c0_i32_0 = arith.constant 0 : i32
    %c0_i32_1 = arith.constant 0 : i32
    return %c0_i32, %c0_i32_0 : i32, i32
  }
  func.func @transform_5(%arg0: i32, %arg1: i32) -> (i32, i32, i32) {
    %c0_i32 = arith.constant 0 : i32
    %c0_i32_0 = arith.constant 0 : i32
    return %arg0, %arg1, %c0_i32 : i32, i32, i32
  }
  func.func @transform_6(%arg0: i32, %arg1: i32) -> (i32, i32, i32) {
    %c0_i32 = arith.constant 0 : i32
    %c0_i32_0 = arith.constant 0 : i32
    return %arg0, %arg1, %c0_i32 : i32, i32, i32
  }
}

</mosaic_0001>

<llo_original>
// kernel: tpu_custom_call.1
$region0: #{tpu_custom_call.1}
  #allocation0 [shape = 'u32[]', space=smem, size = 0x4, offset = 0x4, fixed_abs, tag = 'smem constant byte address 0x4 - core index']
  #allocation1 [shape = 'u32[72,128]{1,0:T(1,128)}', space=vmem, size = 0x9000, scoped, tag = 'internal scratch']
  %s0 = inlined_call_operand.hbm [shape: bf16[2,32,128], index: 0, kind: input, shape index: {}]
  %s1 = inlined_call_operand.hbm [shape: bf16[2,32,128], index: 1, kind: input, shape index: {}]
  %s2 = inlined_call_operand.hbm [shape: bf16[2,32,128], index: 2, kind: input, shape index: {}]
  %s3 = inlined_call_operand.hbm [shape: bf16[3,128,128], index: 3, kind: input, shape index: {}]
  %s4 = inlined_call_operand.vmem [shape: f32[1,128], index: 4, kind: input, shape index: {}]
  %s5 = inlined_call_operand.hbm [shape: bf16[2,32,128], index: 5, kind: input, shape index: {}]
  %s6 = inlined_call_operand.hbm [shape: bf16[2,32,128], index: 6, kind: output, shape index: {}]
  %s7 = sld [smem:[#allocation0]]
  $region77: #{tpu_custom_call.1} parent=0
    _
  %s9 = ssub.s32 1, %s7
  %s10 = scalar_select 0, %s9, %s7
  $region1: #{tpu_custom_call.1} parent=0
    #allocation2 [shape = 'u8[4096]{0}', space=vmem, size = 0x1000, scoped, tag = 'input window, operand 0']
    #allocation3 [shape = 's32[2]{0}', space=sflag, size = 0x8, scoped, tag = 'scoped memory for tpu_custom_call.1']
    #allocation4 [shape = 's32[2]{0}', space=sflag, size = 0x8, scoped, tag = 'scoped memory for tpu_custom_call.1']
    #allocation5 [shape = 'u8[4096]{0}', space=vmem, size = 0x1000, scoped, tag = 'input window, operand 1']
    #allocation6 [shape = 's32[2]{0}', space=sflag, size = 0x8, scoped, tag = 'scoped memory for tpu_custom_call.1']
    #allocation7 [shape = 'u8[4096]{0}', space=vmem, size = 0x1000, scoped, tag = 'input window, operand 2']
    #allocation8 [shape = 'u8[98304]{0}', space=vmem, size = 0x18000, scoped, tag = 'input window, operand 3, single buffered']
    #allocation9 [shape = 's32[1]{0}', space=sflag, size = 0x4, scoped, tag = 'scoped memory for tpu_custom_call.1']
    #allocation10 [shape = 'u8[4096]{0}', space=vmem, size = 0x1000, scoped, tag = 'input window, operand 5']
    #allocation11 [shape = 'u8[4096]{0}', space=vmem, size = 0x1000, scoped, tag = 'output window, operand 0']
    %11 = vsyncpa [#allocation3], 0
    %s12 = scalar_lea.sflag [#allocation3], 1
    %13 = vsyncpa %s12, 0
    %14 = vsyncpa [#allocation6], 0
    %s15 = scalar_lea.sflag [#allocation6], 1
    %16 = vsyncpa %s15, 0
    %17 = vsyncpa [#allocation9], 0
    %18 = vsyncpa [#allocation4], 0
    %s19 = scalar_lea.sflag [#allocation4], 1
    %20 = vsyncpa %s19, 0
    loop: start=0, step=1, limit=10
    $region2: #{tpu_custom_call.1} parent=1 // loop_pre_header
      _
    $region3: #{tpu_custom_call.1} parent=1 // loop_header
      %s22 = sphi 0, %s26
      %p23 = scmp.ge.s32.totalorder %s22, 10
      %s29 = sphi 0, %s41
      %s30 = sphi 0, %s37
      %s31 = sphi 0, %s29
      %s32 = sphi 0, %s30
      %s33 = sphi 0, %s31
      %s34 = sphi 0, %s32
      %s46 = sphi 0, %s48
      %s49 = sphi 0, %s46
      %s50 = sphi 0, %s49
      %s66 = sphi 0, %s50
      %s80 = sphi 0, %s82
      %s83 = sphi 0, %s80
      %s84 = sphi 0, %s83
      %s100 = sphi 0, %s84
      %s114 = sphi 0, %s116
      %s117 = sphi 0, %s114
      %s118 = sphi 0, %s117
      %s134 = sphi 0, %s118
      %s138 = sphi 0, %s138
      %s140 = sphi 0, %s138
      %s141 = sphi 0, %s140
      %s155 = sphi 0, %s141
      %s159 = sphi 0, %s159
      %s161 = sphi 0, %s159
      %s162 = sphi 0, %s161
      %s176 = sphi 0, %s162
      %s184 = sphi 0, %s186
      %s187 = sphi 0, %s184
      %s188 = sphi 0, %s187
      %s204 = sphi 0, %s188
      %s212 = sphi 0, %s214
      %s215 = sphi 0, %s212
      %s216 = sphi 0, %s215
      %s232 = sphi 0, %s216
    $region4: #{tpu_custom_call.1} parent=1 // loop_header_branch
      %25 = sbr.rel (%p23) target = $region8
    $region5: #{tpu_custom_call.1} parent=1 // loop_body
      %s27 = ssub.s32 %s22, 1
      %s28 = ssub.s32 %s22, 2
      %s35 = sadd.s32 1, %s30
      %p36 = scmp.ge.s32.totalorder %s35, 4
      %s37 = scalar_select %p36, 0, %s35
      %s38 = sadd.s32 1, %s29
      %s39 = scalar_select %p36, %s38, %s29
      %p40 = scmp.ge.s32.totalorder %s39, 2
      %s41 = scalar_select %p40, 0, %s39
      %s42 = ssub.s32 %s29, %s41
      %s43 = ssub.s32 %s30, %s37
      %s44 = sor.u32 %s42, %s43
      %p45 = scmp.eq.s32.totalorder %s44, 0
      %s47 = sadd.s32 %s46, 1
      %s48 = scalar_select %p45, %s46, %s47
      %p51 = pneg %p45
      %p52 = scmp.eq.s32.totalorder %s22, 7
      %p53 = por %p51, %p52
      %p54 = scmp.ne.s32.totalorder %s46, %s49
      %p55 = scmp.eq.s32.totalorder %s22, 0
      %p56 = por %p54, %p55
      %p57 = scmp.ne.s32.totalorder %s46, %s49
      %p58 = scmp.eq.s32.totalorder %s27, 7
      %p59 = por %p57, %p58
      %p60 = scmp.ne.s32.totalorder %s49, %s50
      %p61 = scmp.eq.s32.totalorder %s27, 0
      %p62 = por %p60, %p61
      %p63 = scmp.ne.s32.totalorder %s49, %s50
      %p64 = scmp.eq.s32.totalorder %s28, 7
      %p65 = por %p63, %p64
      %p67 = scmp.ne.s32.totalorder %s50, %s66
      %p68 = scmp.eq.s32.totalorder %s28, 0
      %p69 = por %p67, %p68
      %s70 = ssub.s32 %s30, 1
      %p71 = scmp.gt.s32.totalorder %s70, 0
      %s72 = scalar_select %p71, %s70, 0
      %s73 = ssub.s32 %s37, 1
      %p74 = scmp.gt.s32.totalorder %s73, 0
      %s75 = scalar_select %p74, %s73, 0
      %s76 = ssub.s32 %s29, %s41
      %s77 = ssub.s32 %s72, %s75
      %s78 = sor.u32 %s76, %s77
      %p79 = scmp.eq.s32.totalorder %s78, 0
      %s81 = sadd.s32 %s80, 1
      %s82 = scalar_select %p79, %s80, %s81
      %p85 = pneg %p79
      %p86 = scmp.eq.s32.totalorder %s22, 7
      %p87 = por %p85, %p86
      %p88 = scmp.ne.s32.totalorder %s80, %s83
      %p89 = scmp.eq.s32.totalorder %s22, 0
      %p90 = por %p88, %p89
      %p91 = scmp.ne.s32.totalorder %s80, %s83
      %p92 = scmp.eq.s32.totalorder %s27, 7
      %p93 = por %p91, %p92
      %p94 = scmp.ne.s32.totalorder %s83, %s84
      %p95 = scmp.eq.s32.totalorder %s27, 0
      %p96 = por %p94, %p95
      %p97 = scmp.ne.s32.totalorder %s83, %s84
      %p98 = scmp.eq.s32.totalorder %s28, 7
      %p99 = por %p97, %p98
      %p101 = scmp.ne.s32.totalorder %s84, %s100
      %p102 = scmp.eq.s32.totalorder %s28, 0
      %p103 = por %p101, %p102
      %s104 = sadd.s32 %s30, 1
      %p105 = scmp.lt.s32.totalorder %s104, 3
      %s106 = scalar_select %p105, %s104, 3
      %s107 = sadd.s32 %s37, 1
      %p108 = scmp.lt.s32.totalorder %s107, 3
      %s109 = scalar_select %p108, %s107, 3
      %s110 = ssub.s32 %s29, %s41
      %s111 = ssub.s32 %s106, %s109
      %s112 = sor.u32 %s110, %s111
      %p113 = scmp.eq.s32.totalorder %s112, 0
      %s115 = sadd.s32 %s114, 1
      %s116 = scalar_select %p113, %s114, %s115
      %p119 = pneg %p113
      %p120 = scmp.eq.s32.totalorder %s22, 7
      %p121 = por %p119, %p120
      %p122 = scmp.ne.s32.totalorder %s114, %s117
      %p123 = scmp.eq.s32.totalorder %s22, 0
      %p124 = por %p122, %p123
      %p125 = scmp.ne.s32.totalorder %s114, %s117
      %p126 = scmp.eq.s32.totalorder %s27, 7
      %p127 = por %p125, %p126
      %p128 = scmp.ne.s32.totalorder %s117, %s118
      %p129 = scmp.eq.s32.totalorder %s27, 0
      %p130 = por %p128, %p129
      %p131 = scmp.ne.s32.totalorder %s117, %s118
      %p132 = scmp.eq.s32.totalorder %s28, 7
      %p133 = por %p131, %p132
      %p135 = scmp.ne.s32.totalorder %s118, %s134
      %p136 = scmp.eq.s32.totalorder %s28, 0
      %p137 = por %p135, %p136
      %s139 = sadd.s32 %s138, 1
      %p142 = scmp.eq.s32.totalorder %s22, 7
      %p143 = scmp.ne.s32.totalorder %s138, %s140
      %p144 = scmp.eq.s32.totalorder %s22, 0
      %p145 = por %p143, %p144
      %p146 = scmp.ne.s32.totalorder %s138, %s140
      %p147 = scmp.eq.s32.totalorder %s27, 7
      %p148 = por %p146, %p147
      %p149 = scmp.ne.s32.totalorder %s140, %s141
      %p150 = scmp.eq.s32.totalorder %s27, 0
      %p151 = por %p149, %p150
      %p152 = scmp.ne.s32.totalorder %s140, %s141
      %p153 = scmp.eq.s32.totalorder %s28, 7
      %p154 = por %p152, %p153
      %p156 = scmp.ne.s32.totalorder %s141, %s155
      %p157 = scmp.eq.s32.totalorder %s28, 0
      %p158 = por %p156, %p157
      %s160 = sadd.s32 %s159, 1
      %p163 = scmp.eq.s32.totalorder %s22, 7
      %p164 = scmp.ne.s32.totalorder %s159, %s161
      %p165 = scmp.eq.s32.totalorder %s22, 0
      %p166 = por %p164, %p165
      %p167 = scmp.ne.s32.totalorder %s159, %s161
      %p168 = scmp.eq.s32.totalorder %s27, 7
      %p169 = por %p167, %p168
      %p170 = scmp.ne.s32.totalorder %s161, %s162
      %p171 = scmp.eq.s32.totalorder %s27, 0
      %p172 = por %p170, %p171
      %p173 = scmp.ne.s32.totalorder %s161, %s162
      %p174 = scmp.eq.s32.totalorder %s28, 7
      %p175 = por %p173, %p174
      %p177 = scmp.ne.s32.totalorder %s162, %s176
      %p178 = scmp.eq.s32.totalorder %s28, 0
      %p179 = por %p177, %p178
      %s180 = ssub.s32 %s29, %s41
      %s181 = ssub.s32 %s30, %s37
      %s182 = sor.u32 %s180, %s181
      %p183 = scmp.eq.s32.totalorder %s182, 0
      %s185 = sadd.s32 %s184, 1
      %s186 = scalar_select %p183, %s184, %s185
      %p189 = pneg %p183
      %p190 = scmp.eq.s32.totalorder %s22, 7
      %p191 = por %p189, %p190
      %p192 = scmp.ne.s32.totalorder %s184, %s187
      %p193 = scmp.eq.s32.totalorder %s22, 0
      %p194 = por %p192, %p193
      %p195 = scmp.ne.s32.totalorder %s184, %s187
      %p196 = scmp.eq.s32.totalorder %s27, 7
      %p197 = por %p195, %p196
      %p198 = scmp.ne.s32.totalorder %s187, %s188
      %p199 = scmp.eq.s32.totalorder %s27, 0
      %p200 = por %p198, %p199
      %p201 = scmp.ne.s32.totalorder %s187, %s188
      %p202 = scmp.eq.s32.totalorder %s28, 7
      %p203 = por %p201, %p202
      %p205 = scmp.ne.s32.totalorder %s188, %s204
      %p206 = scmp.eq.s32.totalorder %s28, 0
      %p207 = por %p205, %p206
      %s208 = ssub.s32 %s29, %s41
      %s209 = ssub.s32 %s30, %s37
      %s210 = sor.u32 %s208, %s209
      %p211 = scmp.eq.s32.totalorder %s210, 0
      %s213 = sadd.s32 %s212, 1
      %s214 = scalar_select %p211, %s212, %s213
      %p217 = pneg %p211
      %p218 = scmp.eq.s32.totalorder %s22, 7
      %p219 = por %p217, %p218
      %p220 = scmp.ne.s32.totalorder %s212, %s215
      %p221 = scmp.eq.s32.totalorder %s22, 0
      %p222 = por %p220, %p221
      %p223 = scmp.ne.s32.totalorder %s212, %s215
      %p224 = scmp.eq.s32.totalorder %s27, 7
      %p225 = por %p223, %p224
      %p226 = scmp.ne.s32.totalorder %s215, %s216
      %p227 = scmp.eq.s32.totalorder %s27, 0
      %p228 = por %p226, %p227
      %p229 = scmp.ne.s32.totalorder %s215, %s216
      %p230 = scmp.eq.s32.totalorder %s28, 7
      %p231 = por %p229, %p230
      %p233 = scmp.ne.s32.totalorder %s216, %s232
      %p234 = scmp.eq.s32.totalorder %s28, 0
      %p235 = por %p233, %p234
      %p236 = scmp.le.s32.totalorder 1, %s22
      %p237 = scmp.lt.s32.totalorder %s22, 9
      %p238 = pnand %p236, %p237
      %p239 = pneg %p238
      // Predicated region
      $region9: #{tpu_custom_call.1} parent=5 // pred_check
        _
      $region10: #{tpu_custom_call.1} parent=5 // pred_check_branch
        %241 = sbr.rel (%p238) target = $region12
      $region11: #{tpu_custom_call.1} parent=5 // pred_region
        %s242 = ssub.s32 %s22, 1
        // Predicated region
        $region13: #{tpu_custom_call.1} parent=11 // pred_check
          %p243 = pneg %p151
        $region14: #{tpu_custom_call.1} parent=11 // pred_check_branch
          %245 = sbr.rel (%p243) target = $region16
        $region15: #{tpu_custom_call.1} parent=11 // pred_region
          %247 = vsyncadd [#allocation9], 0
          %s248 = sshll.u32 %s3, 4
          %s249 = int_to_ptr.hbm [resolvable:$true] %s248
          %s250 = sshll.u32 [#allocation8], 4
          %s251 = int_to_ptr.vmem [resolvable:$true] %s250
          %256 = dma.hbm_to_vmem [thread:$0]  %s249, 3072, %s251, [#allocation9], 64, 64, 4
        $region16: #{tpu_custom_call.1} parent=11 // pred_fallthru
          _
        // Predicated region
        $region17: #{tpu_custom_call.1} parent=11 // pred_check
          %p257 = pneg %p172
        $region18: #{tpu_custom_call.1} parent=11 // pred_check_branch
          %259 = sbr.rel (%p257) target = $region20
        $region19: #{tpu_custom_call.1} parent=11 // pred_region
          _
        $region20: #{tpu_custom_call.1} parent=11 // pred_fallthru
          _
      $region12: #{tpu_custom_call.1} parent=5 // pred_fallthru
        _
      %p260 = scmp.lt.s32.totalorder %s22, 8
      // Predicated region
      $region21: #{tpu_custom_call.1} parent=5 // pred_check
        %p261 = pneg %p260
      $region22: #{tpu_custom_call.1} parent=5 // pred_check_branch
        %263 = sbr.rel (%p261) target = $region24
      $region23: #{tpu_custom_call.1} parent=5 // pred_region
        // Predicated region
        $region25: #{tpu_custom_call.1} parent=23 // pred_check
          %p264 = pneg %p56
        $region26: #{tpu_custom_call.1} parent=23 // pred_check_branch
          %266 = sbr.rel (%p264) target = $region28
        $region27: #{tpu_custom_call.1} parent=23 // pred_region
          %s267 = sand.u32 %s22, 1
          %s268 = scalar_lea.sflag [#allocation3], %s267
          %s269 = sand.u32 %s46, 1
          %s270 = smul.addr %s269, 4
          %s271 = scalar_lea.vmem [#allocation2], %s270
          %273 = vsyncadd %s268, 0
          %s274 = smul.addr %s29, 4
          %s275 = sadd.s32 %s30, %s274
          %s276 = smul.addr %s275, 4
          %s277 = scalar_lea.hbm %s0, %s276
          %s279 = sshll.u32 %s277, 4
          %s280 = int_to_ptr.hbm [resolvable:$true] %s279
          %s281 = sshll.u32 %s271, 4
          %s282 = int_to_ptr.vmem [resolvable:$true] %s281
          %284 = dma.hbm_to_vmem [thread:$0]  %s280, 64, %s282, %s268
        $region28: #{tpu_custom_call.1} parent=23 // pred_fallthru
          _
        // Predicated region
        $region29: #{tpu_custom_call.1} parent=23 // pred_check
          %p285 = pneg %p90
        $region30: #{tpu_custom_call.1} parent=23 // pred_check_branch
          %287 = sbr.rel (%p285) target = $region32
        $region31: #{tpu_custom_call.1} parent=23 // pred_region
          %s288 = sand.u32 %s22, 1
          %s289 = scalar_lea.sflag [#allocation6], %s288
          %s290 = sand.u32 %s80, 1
          %s291 = smul.addr %s290, 4
          %s292 = scalar_lea.vmem [#allocation5], %s291
          %s293 = ssub.s32 %s30, 1
          %p294 = scmp.gt.s32.totalorder %s293, 0
          %s295 = scalar_select %p294, %s293, 0
          %297 = vsyncadd %s289, 0
          %s298 = smul.addr %s29, 4
          %s299 = sadd.s32 %s295, %s298
          %s300 = smul.addr %s299, 4
          %s301 = scalar_lea.hbm %s1, %s300
          %s303 = sshll.u32 %s301, 4
          %s304 = int_to_ptr.hbm [resolvable:$true] %s303
          %s305 = sshll.u32 %s292, 4
          %s306 = int_to_ptr.vmem [resolvable:$true] %s305
          %308 = dma.hbm_to_vmem [thread:$0]  %s304, 64, %s306, %s289
        $region32: #{tpu_custom_call.1} parent=23 // pred_fallthru
          _
        // Predicated region
        $region33: #{tpu_custom_call.1} parent=23 // pred_check
          %p309 = pneg %p124
        $region34: #{tpu_custom_call.1} parent=23 // pred_check_branch
          %311 = sbr.rel (%p309) target = $region36
        $region35: #{tpu_custom_call.1} parent=23 // pred_region
          %s312 = sand.u32 %s22, 1
          %s313 = scalar_lea.sflag [#allocation6], %s312
          %s314 = sand.u32 %s114, 1
          %s315 = smul.addr %s314, 4
          %s316 = scalar_lea.vmem [#allocation7], %s315
          %s317 = sadd.s32 %s30, 1
          %p318 = scmp.lt.s32.totalorder %s317, 3
          %s319 = scalar_select %p318, %s317, 3
          %321 = vsyncadd %s313, 0
          %s322 = smul.addr %s29, 4
          %s323 = sadd.s32 %s319, %s322
          %s324 = smul.addr %s323, 4
          %s325 = scalar_lea.hbm %s2, %s324
          %s327 = sshll.u32 %s325, 4
          %s328 = int_to_ptr.hbm [resolvable:$true] %s327
          %s329 = sshll.u32 %s316, 4
          %s330 = int_to_ptr.vmem [resolvable:$true] %s329
          %332 = dma.hbm_to_vmem [thread:$0]  %s328, 64, %s330, %s313
        $region36: #{tpu_custom_call.1} parent=23 // pred_fallthru
          _
        // Predicated region
        $region37: #{tpu_custom_call.1} parent=23 // pred_check
          %p333 = pneg %p194
        $region38: #{tpu_custom_call.1} parent=23 // pred_check_branch
          %335 = sbr.rel (%p333) target = $region40
        $region39: #{tpu_custom_call.1} parent=23 // pred_region
          %s336 = sand.u32 %s22, 1
          %s337 = scalar_lea.sflag [#allocation3], %s336
          %s338 = sand.u32 %s184, 1
          %s339 = smul.addr %s338, 4
          %s340 = scalar_lea.vmem [#allocation10], %s339
          %342 = vsyncadd %s337, 0
          %s343 = smul.addr %s29, 4
          %s344 = sadd.s32 %s30, %s343
          %s345 = smul.addr %s344, 4
          %s346 = scalar_lea.hbm %s5, %s345
          %s348 = sshll.u32 %s346, 4
          %s349 = int_to_ptr.hbm [resolvable:$true] %s348
          %s350 = sshll.u32 %s340, 4
          %s351 = int_to_ptr.vmem [resolvable:$true] %s350
          %353 = dma.hbm_to_vmem [thread:$0]  %s349, 64, %s351, %s337
        $region40: #{tpu_custom_call.1} parent=23 // pred_fallthru
          _
      $region24: #{tpu_custom_call.1} parent=5 // pred_fallthru
        _
      %p354 = scmp.le.s32.totalorder 1, %s22
      %p355 = scmp.lt.s32.totalorder %s22, 9
      %p356 = pnand %p354, %p355
      %p357 = pneg %p356
      // Predicated region
      $region41: #{tpu_custom_call.1} parent=5 // pred_check
        _
      $region42: #{tpu_custom_call.1} parent=5 // pred_check_branch
        %359 = sbr.rel (%p356) target = $region44
      $region43: #{tpu_custom_call.1} parent=5 // pred_region
        %s360 = ssub.s32 %s22, 1
        %s361 = sand.u32 %s27, 1
        %s362 = scalar_lea.sflag [#allocation3], %s361
        %s363 = sand.u32 %s49, 1
        %s364 = smul.addr %s363, 4
        %s365 = scalar_lea.vmem [#allocation2], %s364
        // Predicated region
        $region45: #{tpu_custom_call.1} parent=43 // pred_check
          %p366 = pneg %p62
        $region46: #{tpu_custom_call.1} parent=43 // pred_check_branch
          %368 = sbr.rel (%p366) target = $region48
        $region47: #{tpu_custom_call.1} parent=43 // pred_region
          %370 = dma.done %s362, 64
        $region48: #{tpu_custom_call.1} parent=43 // pred_fallthru
          _
        %s371 = sand.u32 %s27, 1
        %s372 = scalar_lea.sflag [#allocation6], %s371
        %s373 = sand.u32 %s83, 1
        %s374 = smul.addr %s373, 4
        %s375 = scalar_lea.vmem [#allocation5], %s374
        // Predicated region
        $region49: #{tpu_custom_call.1} parent=43 // pred_check
          %p376 = pneg %p96
        $region50: #{tpu_custom_call.1} parent=43 // pred_check_branch
          %378 = sbr.rel (%p376) target = $region52
        $region51: #{tpu_custom_call.1} parent=43 // pred_region
          %380 = dma.done %s372, 64
        $region52: #{tpu_custom_call.1} parent=43 // pred_fallthru
          _
        %s381 = sand.u32 %s27, 1
        %s382 = scalar_lea.sflag [#allocation6], %s381
        %s383 = sand.u32 %s117, 1
        %s384 = smul.addr %s383, 4
        %s385 = scalar_lea.vmem [#allocation7], %s384
        // Predicated region
        $region53: #{tpu_custom_call.1} parent=43 // pred_check
          %p386 = pneg %p130
        $region54: #{tpu_custom_call.1} parent=43 // pred_check_branch
          %388 = sbr.rel (%p386) target = $region56
        $region55: #{tpu_custom_call.1} parent=43 // pred_region
          %390 = dma.done %s382, 64
        $region56: #{tpu_custom_call.1} parent=43 // pred_fallthru
          _
        // Predicated region
        $region57: #{tpu_custom_call.1} parent=43 // pred_check
          %p391 = pneg %p151
        $region58: #{tpu_custom_call.1} parent=43 // pred_check_branch
          %393 = sbr.rel (%p391) target = $region60
        $region59: #{tpu_custom_call.1} parent=43 // pred_region
          %395 = dma.done [#allocation9], 3072
        $region60: #{tpu_custom_call.1} parent=43 // pred_fallthru
          _
        %s396 = sand.u32 %s27, 1
        %s397 = scalar_lea.sflag [#allocation3], %s396
        %s398 = sand.u32 %s187, 1
        %s399 = smul.addr %s398, 4
        %s400 = scalar_lea.vmem [#allocation10], %s399
        // Predicated region
        $region61: #{tpu_custom_call.1} parent=43 // pred_check
          %p401 = pneg %p200
        $region62: #{tpu_custom_call.1} parent=43 // pred_check_branch
          %403 = sbr.rel (%p401) target = $region64
        $region63: #{tpu_custom_call.1} parent=43 // pred_region
          %405 = dma.done %s397, 64
        $region64: #{tpu_custom_call.1} parent=43 // pred_fallthru
          _
        %s406 = sand.u32 %s27, 1
        %s407 = scalar_lea.sflag [#allocation3], %s406
        %s408 = sand.u32 %s49, 1
        %s409 = smul.addr %s408, 4
        %s410 = scalar_lea.vmem [#allocation2], %s409
        %p411 = pneg %p62
        %p412 = pneg %p59
        %s413 = sand.u32 %s27, 1
        %s414 = scalar_lea.sflag [#allocation6], %s413
        %s415 = sand.u32 %s83, 1
        %s416 = smul.addr %s415, 4
        %s417 = scalar_lea.vmem [#allocation5], %s416
        %p418 = pneg %p96
        %p419 = pneg %p93
        %s420 = sand.u32 %s27, 1
        %s421 = scalar_lea.sflag [#allocation6], %s420
        %s422 = sand.u32 %s117, 1
        %s423 = smul.addr %s422, 4
        %s424 = scalar_lea.vmem [#allocation7], %s423
        %p425 = pneg %p130
        %p426 = pneg %p127
        %p427 = pneg %p151
        %p428 = pneg %p148
        %p429 = pneg %p172
        %p430 = pneg %p169
        %s431 = sand.u32 %s27, 1
        %s432 = scalar_lea.sflag [#allocation3], %s431
        %s433 = sand.u32 %s187, 1
        %s434 = smul.addr %s433, 4
        %s435 = scalar_lea.vmem [#allocation10], %s434
        %p436 = pneg %p200
        %p437 = pneg %p197
        %p438 = pneg %p228
        %p439 = pneg %p225
        %s440 = sand.u32 %s215, 1
        %s441 = scalar_lea.sflag [#allocation4], %s440
        %s442 = sand.u32 %s215, 1
        %s443 = smul.addr %s442, 4
        %s444 = scalar_lea.vmem [#allocation11], %s443
        %s445 = ssub.s32 %s32, 1
        %p446 = scmp.gt.s32.totalorder %s445, 0
        %s447 = scalar_select %p446, %s445, 0
        %s448 = sadd.s32 %s32, 1
        %p449 = scmp.lt.s32.totalorder %s448, 3
        %s450 = scalar_select %p449, %s448, 3
        %v451 = vld [vmem:[%s365] sm:$0xf]
        %v452 = vld [vmem:[#allocation8] sm:$0xf]
        %v453 = vld [vmem:[#allocation8 + $0x4] sm:$0xf]
        %v454 = vld [vmem:[#allocation8 + $0x8] sm:$0xf]
        %v455 = vld [vmem:[#allocation8 + $0xc] sm:$0xf]
        %v456 = vld [vmem:[#allocation8 + $0x10] sm:$0xf]
        %v457 = vld [vmem:[#allocation8 + $0x14] sm:$0xf]
        %v458 = vld [vmem:[#allocation8 + $0x18] sm:$0xf]
        %v459 = vld [vmem:[#allocation8 + $0x1c] sm:$0xf]
        %v460 = vld [vmem:[#allocation8 + $0x20] sm:$0xf]
        %v461 = vld [vmem:[#allocation8 + $0x24] sm:$0xf]
        %v462 = vld [vmem:[#allocation8 + $0x28] sm:$0xf]
        %v463 = vld [vmem:[#allocation8 + $0x2c] sm:$0xf]
        %v464 = vld [vmem:[#allocation8 + $0x30] sm:$0xf]
        %v465 = vld [vmem:[#allocation8 + $0x34] sm:$0xf]
        %v466 = vld [vmem:[#allocation8 + $0x38] sm:$0xf]
        %v467 = vld [vmem:[#allocation8 + $0x3c] sm:$0xf]
        %v484 = vunpack.c.l.b16 %v452
        %v485 = vunpack.c.l.b16 %v453
        %v486 = vunpack.c.l.b16 %v454
        %v487 = vunpack.c.l.b16 %v455
        %v488 = vunpack.c.l.b16 %v456
        %v489 = vunpack.c.l.b16 %v457
        %v490 = vunpack.c.l.b16 %v458
        %v491 = vunpack.c.l.b16 %v459
        %v492 = vunpack.c.l.b16 %v460
        %v493 = vunpack.c.l.b16 %v461
        %v494 = vunpack.c.l.b16 %v462
        %v495 = vunpack.c.l.b16 %v463
        %v496 = vunpack.c.l.b16 %v464
        %v497 = vunpack.c.l.b16 %v465
        %v498 = vunpack.c.l.b16 %v466
        %v499 = vunpack.c.l.b16 %v467
        %v500 = vpack.c.b16 %v485, %v484
        %v501 = vpack.c.b16 %v487, %v486
        %v502 = vpack.c.b16 %v489, %v488
        %v503 = vpack.c.b16 %v491, %v490
        %v504 = vpack.c.b16 %v493, %v492
        %v505 = vpack.c.b16 %v495, %v494
        %v506 = vpack.c.b16 %v497, %v496
        %v507 = vpack.c.b16 %v499, %v498
        %516 = vmatpush.bf16.msra.mxu0 %v507
        %517 = vmatpush.bf16.msra.mxu0 %v506
        %518 = vmatpush.bf16.msra.mxu0 %v505
        %519 = vmatpush.bf16.msra.mxu0 %v504
        %520 = vmatpush.bf16.msra.mxu0 %v503
        %521 = vmatpush.bf16.msra.mxu0 %v502
        %522 = vmatpush.bf16.msra.mxu0 %v501
        %523 = vmatpush.bf16.msra.mxu0 %v500
        %524 = vmatmul.bf16.gmra.mxu0 %v451
        %v525 = vpop.f32.mrf.mxu0
        %v526 = vadd.f32 0.0, %v525
        %v527 = vpop.f32.mrf.mxu0
        %528 = vdwg.mxu0
        %s529 = scalar_lea.vmem [#allocation8], 64
        %v530 = vld [vmem:[%s529] sm:$0xf]
        %v531 = vld [vmem:[%s529 + $0x4] sm:$0xf]
        %v532 = vld [vmem:[%s529 + $0x8] sm:$0xf]
        %v533 = vld [vmem:[%s529 + $0xc] sm:$0xf]
        %v534 = vld [vmem:[%s529 + $0x10] sm:$0xf]
        %v535 = vld [vmem:[%s529 + $0x14] sm:$0xf]
        %v536 = vld [vmem:[%s529 + $0x18] sm:$0xf]
        %v537 = vld [vmem:[%s529 + $0x1c] sm:$0xf]
        %v538 = vld [vmem:[%s529 + $0x20] sm:$0xf]
        %v539 = vld [vmem:[%s529 + $0x24] sm:$0xf]
        %v540 = vld [vmem:[%s529 + $0x28] sm:$0xf]
        %v541 = vld [vmem:[%s529 + $0x2c] sm:$0xf]
        %v542 = vld [vmem:[%s529 + $0x30] sm:$0xf]
        %v543 = vld [vmem:[%s529 + $0x34] sm:$0xf]
        %v544 = vld [vmem:[%s529 + $0x38] sm:$0xf]
        %v545 = vld [vmem:[%s529 + $0x3c] sm:$0xf]
        %s546 = scalar_lea.vmem [#allocation8], 128
        %v547 = vld [vmem:[%s546] sm:$0xf]
        %v548 = vld [vmem:[%s546 + $0x4] sm:$0xf]
        %v549 = vld [vmem:[%s546 + $0x8] sm:$0xf]
        %v550 = vld [vmem:[%s546 + $0xc] sm:$0xf]
        %v551 = vld [vmem:[%s546 + $0x10] sm:$0xf]
        %v552 = vld [vmem:[%s546 + $0x14] sm:$0xf]
        %v553 = vld [vmem:[%s546 + $0x18] sm:$0xf]
        %v554 = vld [vmem:[%s546 + $0x1c] sm:$0xf]
        %v555 = vld [vmem:[%s546 + $0x20] sm:$0xf]
        %v556 = vld [vmem:[%s546 + $0x24] sm:$0xf]
        %v557 = vld [vmem:[%s546 + $0x28] sm:$0xf]
        %v558 = vld [vmem:[%s546 + $0x2c] sm:$0xf]
        %v559 = vld [vmem:[%s546 + $0x30] sm:$0xf]
        %v560 = vld [vmem:[%s546 + $0x34] sm:$0xf]
        %v561 = vld [vmem:[%s546 + $0x38] sm:$0xf]
        %v562 = vld [vmem:[%s546 + $0x3c] sm:$0xf]
        %v579 = vunpack.c.l.b16 %v547
        %v580 = vunpack.c.l.b16 %v548
        %v581 = vunpack.c.l.b16 %v549
        %v582 = vunpack.c.l.b16 %v550
        %v583 = vunpack.c.l.b16 %v551
        %v584 = vunpack.c.l.b16 %v552
        %v585 = vunpack.c.l.b16 %v553
        %v586 = vunpack.c.l.b16 %v554
        %v587 = vunpack.c.l.b16 %v555
        %v588 = vunpack.c.l.b16 %v556
        %v589 = vunpack.c.l.b16 %v557
        %v590 = vunpack.c.l.b16 %v558
        %v591 = vunpack.c.l.b16 %v559
        %v592 = vunpack.c.l.b16 %v560
        %v593 = vunpack.c.l.b16 %v561
        %v594 = vunpack.c.l.b16 %v562
        %v595 = vpack.c.b16 %v580, %v579
        %v596 = vpack.c.b16 %v582, %v581
        %v597 = vpack.c.b16 %v584, %v583
        %v598 = vpack.c.b16 %v586, %v585
        %v599 = vpack.c.b16 %v588, %v587
        %v600 = vpack.c.b16 %v590, %v589
        %v601 = vpack.c.b16 %v592, %v591
        %v602 = vpack.c.b16 %v594, %v593
        %611 = vmatpush.bf16.msra.mxu0 %v602
        %612 = vmatpush.bf16.msra.mxu0 %v601
        %613 = vmatpush.bf16.msra.mxu0 %v600
        %614 = vmatpush.bf16.msra.mxu0 %v599
        %615 = vmatpush.bf16.msra.mxu0 %v598
        %616 = vmatpush.bf16.msra.mxu0 %v597
        %617 = vmatpush.bf16.msra.mxu0 %v596
        %618 = vmatpush.bf16.msra.mxu0 %v595
        %619 = vmatmul.bf16.gmra.mxu0 %v451
        %v620 = vpop.f32.mrf.mxu0
        %v621 = vadd.f32 0.0, %v620
        %v622 = vpop.f32.mrf.mxu0
        %623 = vdwg.mxu0
        %v624 = vld [vmem:[%s375] sm:$0xf]
        %625 = vmatpush.bf16.msra.mxu0 %v507
        %626 = vmatpush.bf16.msra.mxu0 %v506
        %627 = vmatpush.bf16.msra.mxu0 %v505
        %628 = vmatpush.bf16.msra.mxu0 %v504
        %629 = vmatpush.bf16.msra.mxu0 %v503
        %630 = vmatpush.bf16.msra.mxu0 %v502
        %631 = vmatpush.bf16.msra.mxu0 %v501
        %632 = vmatpush.bf16.msra.mxu0 %v500
        %633 = vmatmul.bf16.gmra.mxu0 %v624
        %v634 = vpop.f32.mrf.mxu0
        %v635 = vadd.f32 0.0, %v634
        %v636 = vpop.f32.mrf.mxu0
        %637 = vdwg.mxu0
        %v638 = vld [vmem:[%s385] sm:$0xf]
        %639 = vmatpush.bf16.msra.mxu0 %v602
        %640 = vmatpush.bf16.msra.mxu0 %v601
        %641 = vmatpush.bf16.msra.mxu0 %v600
        %642 = vmatpush.bf16.msra.mxu0 %v599
        %643 = vmatpush.bf16.msra.mxu0 %v598
        %644 = vmatpush.bf16.msra.mxu0 %v597
        %645 = vmatpush.bf16.msra.mxu0 %v596
        %646 = vmatpush.bf16.msra.mxu0 %v595
        %647 = vmatmul.bf16.gmra.mxu0 %v638
        %v648 = vpop.f32.mrf.mxu0
        %v649 = vadd.f32 0.0, %v648
        %v650 = vpop.f32.mrf.mxu0
        %651 = vdwg.mxu0
        %p652 = scmp.gt.s32.totalorder %s32, 0
        %s653 = scalar_select %p652, 1, 0
        %s654 = scvt.s32.f32 %s653
        %p655 = scmp.lt.s32.totalorder %s32, 3
        %s656 = scalar_select %p655, 1, 0
        %s657 = scvt.s32.f32 %s656
        %v658 = vstv %s654
        %v659 = vmul.f32 %v635, %v658
        %v660 = vstv %s657
        %v661 = vmul.f32 %v649, %v660
        %v663 = vrot.slane %v659, 7
        %v666 = vrot.slane %v526, 7
        %vm668 = vcmask 1040384
        %v669 = vsel %vm668, %v663, %v666
        %v686 = vunpack.c.l.b16 %v530
        %v687 = vunpack.c.l.b16 %v531
        %v688 = vunpack.c.l.b16 %v532
        %v689 = vunpack.c.l.b16 %v533
        %v690 = vunpack.c.l.b16 %v534
        %v691 = vunpack.c.l.b16 %v535
        %v692 = vunpack.c.l.b16 %v536
        %v693 = vunpack.c.l.b16 %v537
        %v694 = vunpack.c.l.b16 %v538
        %v695 = vunpack.c.l.b16 %v539
        %v696 = vunpack.c.l.b16 %v540
        %v697 = vunpack.c.l.b16 %v541
        %v698 = vunpack.c.l.b16 %v542
        %v699 = vunpack.c.l.b16 %v543
        %v700 = vunpack.c.l.b16 %v544
        %v701 = vunpack.c.l.b16 %v545
        %v702 = vpack.c.b16 %v687, %v686
        %v703 = vpack.c.b16 %v689, %v688
        %v704 = vpack.c.b16 %v691, %v690
        %v705 = vpack.c.b16 %v693, %v692
        %v706 = vpack.c.b16 %v695, %v694
        %v707 = vpack.c.b16 %v697, %v696
        %v708 = vpack.c.b16 %v699, %v698
        %v709 = vpack.c.b16 %v701, %v700
        %718 = vmatpush.bf16.msra.mxu0 %v709
        %719 = vmatpush.bf16.msra.mxu0 %v708
        %720 = vmatpush.bf16.msra.mxu0 %v707
        %721 = vmatpush.bf16.msra.mxu0 %v706
        %722 = vmatpush.bf16.msra.mxu0 %v705
        %723 = vmatpush.bf16.msra.mxu0 %v704
        %724 = vmatpush.bf16.msra.mxu0 %v703
        %725 = vmatpush.bf16.msra.mxu0 %v702
        %726 = vmatmul.bf16.gmra.mxu0 %v451
        %v727 = vpop.f32.mrf.mxu0
        %v728 = vadd.f32 %v669, %v727
        %v729 = vpop.f32.mrf.mxu0
        %730 = vdwg.mxu0
        %v732 = vrot.slane %v621, 1
        %v735 = vrot.slane %v661, 1
        %vm737 = vcmask 1046528
        %v738 = vsel %vm737, %v732, %v735
        %v739 = vadd.f32 %v728, %v738
        %v740 = vld [vmem:[%s4] sm:$0x1]
        %v742 = vperm.slane %v740, 0
        %v744 = vadd.f32 %v739, %v742
        %v745 = vld [vmem:[%s400] sm:$0xf]
        %v746 = vunpack.c.l.bf16 %v745
        %v747 = vadd.f32 %v744, %v746
        %v748 = vmax.f32 %v747, 0.0
        %v749 = vpack.c.bf16 %v748, %v748
        %750 = vst [vmem:[%s444] sm:$0xf] %v749
        %s751 = sand.u32 %s215, 1
        %s752 = scalar_lea.sflag [#allocation4], %s751
        %s753 = sand.u32 %s215, 1
        %s754 = smul.addr %s753, 4
        %s755 = scalar_lea.vmem [#allocation11], %s754
        // Predicated region
        $region65: #{tpu_custom_call.1} parent=43 // pred_check
          %p756 = pneg %p225
        $region66: #{tpu_custom_call.1} parent=43 // pred_check_branch
          %758 = sbr.rel (%p756) target = $region68
        $region67: #{tpu_custom_call.1} parent=43 // pred_region
          %760 = vsyncadd %s752, 0
          %s761 = smul.addr %s31, 4
          %s762 = sadd.s32 %s32, %s761
          %s763 = smul.addr %s762, 4
          %s764 = scalar_lea.hbm %s6, %s763
          %s766 = sshll.u32 %s755, 4
          %s767 = int_to_ptr.vmem [resolvable:$true] %s766
          %s768 = sshll.u32 %s764, 4
          %s769 = int_to_ptr.hbm [resolvable:$true] %s768
          %771 = dma.vmem_to_hbm [thread:$0]  %s767, 64, %s769, %s752
        $region68: #{tpu_custom_call.1} parent=43 // pred_fallthru
          _
      $region44: #{tpu_custom_call.1} parent=5 // pred_fallthru
        _
      %p772 = scmp.le.s32.totalorder 2, %s22
      // Predicated region
      $region69: #{tpu_custom_call.1} parent=5 // pred_check
        %p773 = pneg %p772
      $region70: #{tpu_custom_call.1} parent=5 // pred_check_branch
        %775 = sbr.rel (%p773) target = $region72
      $region71: #{tpu_custom_call.1} parent=5 // pred_region
        %s776 = ssub.s32 %s22, 2
        // Predicated region
        $region73: #{tpu_custom_call.1} parent=71 // pred_check
          %p777 = pneg %p231
        $region74: #{tpu_custom_call.1} parent=71 // pred_check_branch
          %779 = sbr.rel (%p777) target = $region76
        $region75: #{tpu_custom_call.1} parent=71 // pred_region
          %s780 = sand.u32 %s216, 1
          %s781 = scalar_lea.sflag [#allocation4], %s780
          %s782 = sand.u32 %s216, 1
          %s783 = smul.addr %s782, 4
          %s784 = scalar_lea.vmem [#allocation11], %s783
          %786 = dma.done %s781, 64
        $region76: #{tpu_custom_call.1} parent=71 // pred_fallthru
          _
      $region72: #{tpu_custom_call.1} parent=5 // pred_fallthru
        _
    $region6: #{tpu_custom_call.1} parent=1 // loop_footer
      %s26 = sadd.s32 1, %s22
    $region7: #{tpu_custom_call.1} parent=1 // loop_footer_branch
      %21 = sbr.rel target = $region3
    $region8: #{tpu_custom_call.1} parent=1 // loop_exit
      _
    %787 = vsyncpa [#allocation3], 1
    %s788 = scalar_lea.sflag [#allocation3], 1
    %789 = vsyncpa %s788, 1
    %790 = vsyncpa [#allocation6], 1
    %s791 = scalar_lea.sflag [#allocation6], 1
    %792 = vsyncpa %s791, 1
    %793 = vsyncpa [#allocation9], 1
    %794 = vsyncpa [#allocation4], 1
    %s795 = scalar_lea.sflag [#allocation4], 1
    %796 = vsyncpa %s795, 1

</llo_original>
